<compile_context>
chip_gen: v7x
topology: tpu7x:2x2x1
jax: 0.10.0
libtpu: 0.0.40
codegen_flags: <defaults>
</compile_context>

<pallas_src>
import jax
import jax.numpy as jnp
from jax.experimental import pallas as pl
from jax.experimental.pallas import tpu as pltpu

MC_SAMPLES = 50
HIDDEN = 100
BN_EPS = 1e-5
NEG_BIG = -1e30  # bias for padded class lanes -> exp() == 0 in softmax


def _round_up(n, m):
    return ((n + m - 1) // m) * m


def _dropout_masks(key, p, mc, rows, cols):
    """Keep-masks for all MC samples at once; survivors pre-scaled by 1/(1-p)."""
    keep = jax.random.bernoulli(key, 1.0 - p, (mc, rows, cols))
    return keep.astype(jnp.float32) * jnp.float32(1.0 / (1.0 - p))


def _mc_gate_kernel(x_ref, w1_ref, bn_scale_ref, bn_shift_ref, drop_ref,
                    w2_ref, b2_ref, out_ref):
    """Single-step kernel: all MC-dropout samples batched into one pass."""
    mc, bp, hid = drop_ref.shape
    out_p = out_ref.shape[-1]

    # ---- Linear1 + BatchNorm(eval) + ReLU: shared by every MC sample ----
    z = jnp.dot(x_ref[...], w1_ref[...], preferred_element_type=jnp.float32)
    h = jnp.maximum(z * bn_scale_ref[...] + bn_shift_ref[...], 0.0)      # (bp, hid) f32

    # ---- all MC dropout samples at once -> one big MXU matmul ----
    # drop_ref holds 0 or 1/(1-p) (inverted-dropout scale already folded in).
    h_mc = (drop_ref[...] * h[None, :, :]).reshape(mc * bp, hid)
    logits = jnp.dot(h_mc.astype(w2_ref.dtype), w2_ref[...],
                     preferred_element_type=jnp.float32) + b2_ref[...]    # (mc*bp, out_p)

    # ---- softmax over the padded class axis (padded lanes: bias = -1e30 -> exp = 0) ----
    m = jnp.max(logits, axis=-1, keepdims=True)
    e = jnp.exp(logits - m)
    probs = e * pl.reciprocal(jnp.sum(e, axis=-1, keepdims=True), approx=True)

    # ---- mean over the MC axis, single lane-dense store ----
    out_ref[...] = (jnp.sum(probs.reshape(mc, bp, out_p), axis=0)
                    * (1.0 / mc)).astype(out_ref.dtype)


def simple_mc_drop_gate(x, params, *, p, key, mc_samples=MC_SAMPLES):
    """Eval-mode forward of SimpleMCDropGate (mean of mc_samples dropout passes)."""
    assert 0.0 <= p < 1.0, "dropout probability must be in [0, 1)"
    B = x.shape[0]
    in_feat = params["w1"].shape[0]
    out_feat = params["w2"].shape[1]
    x2d = x.reshape(B, in_feat).astype(jnp.float32)

    bp = _round_up(max(B, 8), 8)        # sublane-aligned batch
    in_p = _round_up(in_feat, 128)      # lane-aligned feature dims
    hid_p = _round_up(HIDDEN, 128)
    out_p = _round_up(out_feat, 128)

    # --- zero-pad everything to lane/sublane-aligned shapes ---
    xp = jnp.zeros((bp, in_p), jnp.float32).at[:B, :in_feat].set(x2d)
    w1p = jnp.zeros((in_p, hid_p), jnp.float32).at[:in_feat, :HIDDEN].set(params["w1"])
    w2p = jnp.zeros((hid_p, out_p), jnp.float32).at[:HIDDEN, :out_feat].set(params["w2"])
    # Fold Linear1 bias into the BatchNorm affine: (z + b1)*s + t == z*s + (b1*s + t)
    scale = jnp.zeros((1, hid_p), jnp.float32).at[:, :HIDDEN].set(params["bn_scale"])
    shift = jnp.zeros((1, hid_p), jnp.float32).at[:, :HIDDEN].set(
        params["bn_shift"] + params["b1"] * params["bn_scale"])
    # Padded class lanes get a huge negative bias -> zero probability after softmax.
    b2p = jnp.full((1, out_p), NEG_BIG, jnp.float32).at[:, :out_feat].set(params["b2"])

    # --- dropout masks for all MC samples, drawn once host-side ---
    drop = _dropout_masks(key, p, mc_samples, bp, hid_p)

    full = lambda shape: pl.BlockSpec(shape, lambda i, _s=shape: (0,) * len(_s))

    out = pl.pallas_call(
        _mc_gate_kernel,
        out_shape=jax.ShapeDtypeStruct((bp, out_p), jnp.float32),
        grid=(1,),                                   # grid collapsed: one step does it all
        in_specs=[
            full((bp, in_p)),                        # x   (bf16)
            full((in_p, hid_p)),                     # W1  (bf16, stored [in, hid])
            full((1, hid_p)),                        # BN scale
            full((1, hid_p)),                        # BN shift (+ folded Linear1 bias)
            full((mc_samples, bp, hid_p)),           # dropout masks (0 or 1/(1-p))
            full((hid_p, out_p)),                    # W2  (bf16, stored [hid, out])
            full((1, out_p)),                        # b2  (padded lanes = -1e30)
        ],
        out_specs=full((bp, out_p)),
        compiler_params=pltpu.CompilerParams(
            dimension_semantics=("arbitrary",)),
        # Note: for production batch sizes, add a leading "parallel" grid axis over batch
        # tiles so v7x's second TensorCore is used; unnecessary at these sizes.
    )(xp.astype(jnp.bfloat16), w1p.astype(jnp.bfloat16), scale, shift, drop,
      w2p.astype(jnp.bfloat16), b2p)

    return out[:B, :out_feat]


def reference_forward(x, params, *, p, key, mc_samples=MC_SAMPLES):
    """Pure-JAX f32 reference using the exact same dropout masks as the kernel."""
    B = x.shape[0]
    in_feat = params["w1"].shape[0]
    x2d = x.reshape(B, in_feat).astype(jnp.float32)
    bp = _round_up(max(B, 8), 8)
    hid_p = _round_up(HIDDEN, 128)
    drop = _dropout_masks(key, p, mc_samples, bp, hid_p)[:, :B, :HIDDEN]

    h = x2d @ params["w1"] + params["b1"]
    h = h * params["bn_scale"] + params["bn_shift"]
    h = jnp.maximum(h, 0.0)
    logits = (drop * h[None]) @ params["w2"] + params["b2"]
    return jax.nn.softmax(logits, axis=-1).mean(axis=0)


def init_params(key, in_feat, out_feat):
    """Matches the PyTorch module's init_weights: Linear weights ~ xavier_normal,
    biases ~ N(0,1); BatchNorm1d defaults, eval running stats folded into scale/shift."""
    k1, k2, k3, k4 = jax.random.split(key, 4)
    std1 = (2.0 / (in_feat + HIDDEN)) ** 0.5
    std2 = (2.0 / (HIDDEN + out_feat)) ** 0.5
    w1 = jax.random.normal(k1, (in_feat, HIDDEN), jnp.float32) * std1
    b1 = jax.random.normal(k2, (1, HIDDEN), jnp.float32)
    w2 = jax.random.normal(k3, (HIDDEN, out_feat), jnp.float32) * std2
    b2 = jax.random.normal(k4, (1, out_feat), jnp.float32)
    gamma = jnp.ones((1, HIDDEN), jnp.float32)
    beta = jnp.zeros((1, HIDDEN), jnp.float32)
    running_mean = jnp.zeros((1, HIDDEN), jnp.float32)
    running_var = jnp.ones((1, HIDDEN), jnp.float32)
    bn_scale = gamma / jnp.sqrt(running_var + BN_EPS)
    bn_shift = beta - running_mean * bn_scale
    return dict(w1=w1, b1=b1, w2=w2, b2=b2, bn_scale=bn_scale, bn_shift=bn_shift)


if __name__ == "__main__":
    B, IN_FEAT, OUT_FEAT, P = 8, 32, 8, 0.2
    root = jax.random.PRNGKey(0)
    kp, kx, kdrop = jax.random.split(root, 3)
    params = init_params(kp, IN_FEAT, OUT_FEAT)
    x = jax.random.normal(kx, (B, IN_FEAT), jnp.float32)

    out = simple_mc_drop_gate(x, params, p=P, key=kdrop)
    out = jax.block_until_ready(out)

    assert out.shape == (B, OUT_FEAT)
    assert bool(jnp.all(jnp.isfinite(out)))
    # Mean of softmaxes -> rows sum to ~1 (approx reciprocal loosens the bound slightly).
    assert bool(jnp.all(jnp.abs(jnp.sum(out, axis=-1) - 1.0) < 1e-2))
    # Agree with the pure-JAX f32 reference (bf16 matmuls + approx recip -> loose tol).
    ref = reference_forward(x, params, p=P, key=kdrop)
    assert float(jnp.max(jnp.abs(out - ref))) < 5e-2
    print("KERNEL_OK")
</pallas_src>

<mosaic_0001>
module attributes {stable_mosaic.version = 11 : i64} {
  func.func @_mc_gate_kernel(%arg0: i32, %arg1: memref<8x128xbf16, #tpu.memory_space<vmem>>, %arg2: memref<128x128xbf16, #tpu.memory_space<vmem>>, %arg3: memref<1x128xf32, #tpu.memory_space<vmem>>, %arg4: memref<1x128xf32, #tpu.memory_space<vmem>>, %arg5: memref<50x8x128xf32, #tpu.memory_space<vmem>>, %arg6: memref<128x128xbf16, #tpu.memory_space<vmem>>, %arg7: memref<1x128xf32, #tpu.memory_space<vmem>>, %arg8: memref<8x128xf32, #tpu.memory_space<vmem>>) attributes {dimension_semantics = [#tpu.dimension_semantics<arbitrary>], iteration_bounds = array<i64: 1>, scalar_prefetch = 0 : i64, scratch_operands = 0 : i64, tpu.core_type = #tpu.core_type<tc>, window_params = [{pipeline_mode = #tpu.pipeline_mode<synchronous>, transform_indices = @transform_0, window_bounds = array<i64: 8, 128>}, {pipeline_mode = #tpu.pipeline_mode<synchronous>, transform_indices = @transform_1, window_bounds = array<i64: 128, 128>}, {pipeline_mode = #tpu.pipeline_mode<synchronous>, transform_indices = @transform_2, window_bounds = array<i64: 1, 128>}, {pipeline_mode = #tpu.pipeline_mode<synchronous>, transform_indices = @transform_3, window_bounds = array<i64: 1, 128>}, {pipeline_mode = #tpu.pipeline_mode<synchronous>, transform_indices = @transform_4, window_bounds = array<i64: 50, 8, 128>}, {pipeline_mode = #tpu.pipeline_mode<synchronous>, transform_indices = @transform_5, window_bounds = array<i64: 128, 128>}, {pipeline_mode = #tpu.pipeline_mode<synchronous>, transform_indices = @transform_6, window_bounds = array<i64: 1, 128>}, {pipeline_mode = #tpu.pipeline_mode<synchronous>, transform_indices = @transform_7, window_bounds = array<i64: 8, 128>}]} {
    %c0 = arith.constant 0 : index
    %c0_0 = arith.constant 0 : index
    %0 = vector.load %arg1[%c0, %c0_0] : memref<8x128xbf16, #tpu.memory_space<vmem>>, vector<8x128xbf16>
    %c0_1 = arith.constant 0 : index
    %c0_2 = arith.constant 0 : index
    %1 = vector.load %arg2[%c0_1, %c0_2] : memref<128x128xbf16, #tpu.memory_space<vmem>>, vector<128x128xbf16>
    %cst = arith.constant dense<0.000000e+00> : vector<8x128xf32>
    %2 = tpu.matmul %0, %1, %cst {dimension_numbers = #tpu.dot_dimension_numbers<[1], [0], [0], [1], [0, 0, 1, 1], [], []>} : vector<8x128xbf16>, vector<128x128xbf16>, vector<8x128xf32> -> vector<8x128xf32>
    %c0_3 = arith.constant 0 : index
    %c0_4 = arith.constant 0 : index
    %3 = vector.load %arg3[%c0_3, %c0_4] : memref<1x128xf32, #tpu.memory_space<vmem>>, vector<1x128xf32>
    %4 = vector.broadcast %3 : vector<1x128xf32> to vector<8x128xf32>
    %5 = arith.mulf %2, %4 : vector<8x128xf32>
    %c0_5 = arith.constant 0 : index
    %c0_6 = arith.constant 0 : index
    %6 = vector.load %arg4[%c0_5, %c0_6] : memref<1x128xf32, #tpu.memory_space<vmem>>, vector<1x128xf32>
    %7 = vector.broadcast %6 : vector<1x128xf32> to vector<8x128xf32>
    %8 = arith.addf %5, %7 : vector<8x128xf32>
    %cst_7 = arith.constant 0.000000e+00 : f32
    %9 = vector.broadcast %cst_7 : f32 to vector<8x128xf32>
    %10 = arith.maximumf %8, %9 : vector<8x128xf32>
    %c0_8 = arith.constant 0 : index
    %c0_9 = arith.constant 0 : index
    %c0_10 = arith.constant 0 : index
    %11 = vector.load %arg5[%c0_8, %c0_9, %c0_10] : memref<50x8x128xf32, #tpu.memory_space<vmem>>, vector<50x8x128xf32>
    %12 = vector.shape_cast %10 : vector<8x128xf32> to vector<1x8x128xf32>
    %13 = vector.broadcast %12 : vector<1x8x128xf32> to vector<50x8x128xf32>
    %14 = arith.mulf %11, %13 : vector<50x8x128xf32>
    %15 = vector.shape_cast %14 : vector<50x8x128xf32> to vector<400x128xf32>
    %16 = arith.truncf %15 : vector<400x128xf32> to vector<400x128xbf16>
    %c0_11 = arith.constant 0 : index
    %c0_12 = arith.constant 0 : index
    %17 = vector.load %arg6[%c0_11, %c0_12] : memref<128x128xbf16, #tpu.memory_space<vmem>>, vector<128x128xbf16>
    %cst_13 = arith.constant dense<0.000000e+00> : vector<400x128xf32>
    %18 = tpu.matmul %16, %17, %cst_13 {dimension_numbers = #tpu.dot_dimension_numbers<[1], [0], [0], [1], [0, 0, 1, 1], [], []>} : vector<400x128xbf16>, vector<128x128xbf16>, vector<400x128xf32> -> vector<400x128xf32>
    %c0_14 = arith.constant 0 : index
    %c0_15 = arith.constant 0 : index
    %19 = vector.load %arg7[%c0_14, %c0_15] : memref<1x128xf32, #tpu.memory_space<vmem>>, vector<1x128xf32>
    %20 = vector.broadcast %19 : vector<1x128xf32> to vector<400x128xf32>
    %21 = arith.addf %18, %20 : vector<400x128xf32>
    %cst_16 = arith.constant dense<0xFF800000> : vector<400xf32>
    %22 = vector.multi_reduction <maximumf>, %21, %cst_16 [1] : vector<400x128xf32> to vector<400xf32>
    %23 = vector.shape_cast %22 : vector<400xf32> to vector<400x1xf32>
    %24 = vector.broadcast %23 : vector<400x1xf32> to vector<400x128xf32>
    %25 = arith.subf %21, %24 : vector<400x128xf32>
    %26 = math.exp %25 : vector<400x128xf32>
    %cst_17 = arith.constant dense<0.000000e+00> : vector<400xf32>
    %27 = vector.multi_reduction <add>, %26, %cst_17 [1] : vector<400x128xf32> to vector<400xf32>
    %28 = vector.shape_cast %27 : vector<400xf32> to vector<400x1xf32>
    %29 = tpu.reciprocal %28 {approx = true} : vector<400x1xf32> -> vector<400x1xf32>
    %30 = vector.broadcast %29 : vector<400x1xf32> to vector<400x128xf32>
    %31 = arith.mulf %26, %30 : vector<400x128xf32>
    %32 = vector.shape_cast %31 : vector<400x128xf32> to vector<50x8x128xf32>
    %cst_18 = arith.constant dense<0.000000e+00> : vector<8x128xf32>
    %33 = vector.multi_reduction <add>, %32, %cst_18 [0] : vector<50x8x128xf32> to vector<8x128xf32>
    %cst_19 = arith.constant 2.000000e-02 : f32
    %34 = vector.broadcast %cst_19 : f32 to vector<8x128xf32>
    %35 = arith.mulf %33, %34 : vector<8x128xf32>
    %c0_20 = arith.constant 0 : index
    %c0_21 = arith.constant 0 : index
    %36 = vector.load %arg8[%c0_20, %c0_21] : memref<8x128xf32, #tpu.memory_space<vmem>>, vector<8x128xf32>
    tpu.vector_store %arg8[%c0_20, %c0_21], %35 {strides = array<i32>} : memref<8x128xf32, #tpu.memory_space<vmem>>, vector<8x128xf32>,
    return
  }
  func.func @transform_0(%arg0: i32) -> (i32, i32) {
    %c0_i32 = arith.constant 0 : i32
    %c0_i32_0 = arith.constant 0 : i32
    %c0_i32_1 = arith.constant 0 : i32
    return %c0_i32, %c0_i32_0 : i32, i32
  }
  func.func @transform_1(%arg0: i32) -> (i32, i32) {
    %c0_i32 = arith.constant 0 : i32
    %c0_i32_0 = arith.constant 0 : i32
    %c0_i32_1 = arith.constant 0 : i32
    return %c0_i32, %c0_i32_0 : i32, i32
  }
  func.func @transform_2(%arg0: i32) -> (i32, i32) {
    %c0_i32 = arith.constant 0 : i32
    %c0_i32_0 = arith.constant 0 : i32
    %c0_i32_1 = arith.constant 0 : i32
    return %c0_i32, %c0_i32_0 : i32, i32
  }
  func.func @transform_3(%arg0: i32) -> (i32, i32) {
    %c0_i32 = arith.constant 0 : i32
    %c0_i32_0 = arith.constant 0 : i32
    %c0_i32_1 = arith.constant 0 : i32
    return %c0_i32, %c0_i32_0 : i32, i32
  }
  func.func @transform_4(%arg0: i32) -> (i32, i32, i32) {
    %c0_i32 = arith.constant 0 : i32
    %c0_i32_0 = arith.constant 0 : i32
    %c0_i32_1 = arith.constant 0 : i32
    %c0_i32_2 = arith.constant 0 : i32
    return %c0_i32, %c0_i32_0, %c0_i32_1 : i32, i32, i32
  }
  func.func @transform_5(%arg0: i32) -> (i32, i32) {
    %c0_i32 = arith.constant 0 : i32
    %c0_i32_0 = arith.constant 0 : i32
    %c0_i32_1 = arith.constant 0 : i32
    return %c0_i32, %c0_i32_0 : i32, i32
  }
  func.func @transform_6(%arg0: i32) -> (i32, i32) {
    %c0_i32 = arith.constant 0 : i32
    %c0_i32_0 = arith.constant 0 : i32
    %c0_i32_1 = arith.constant 0 : i32
    return %c0_i32, %c0_i32_0 : i32, i32
  }
  func.func @transform_7(%arg0: i32) -> (i32, i32) {
    %c0_i32 = arith.constant 0 : i32
    %c0_i32_0 = arith.constant 0 : i32
    %c0_i32_1 = arith.constant 0 : i32
    return %c0_i32, %c0_i32_0 : i32, i32
  }
}

</mosaic_0001>

<llo_original>
// kernel: tpu_custom_call.1
$region0: #{tpu_custom_call.1}
  #allocation0 [shape = 'u32[]', space=smem, size = 0x4, offset = 0x4, fixed_abs, tag = 'smem constant byte address 0x4 - core index']
  #allocation1 [shape = 'u32[144,128]{1,0:T(1,128)}', space=vmem, size = 0x12000, scoped, tag = 'internal scratch']
  %s0 = inlined_call_operand.hbm [shape: bf16[8,128], index: 0, kind: input, shape index: {}]
  %s1 = inlined_call_operand.hbm [shape: bf16[128,128], index: 1, kind: input, shape index: {}]
  %s2 = inlined_call_operand.vmem [shape: f32[1,128], index: 2, kind: input, shape index: {}]
  %s3 = inlined_call_operand.vmem [shape: f32[1,128], index: 3, kind: input, shape index: {}]
  %s4 = inlined_call_operand.hbm [shape: f32[50,8,128], index: 4, kind: input, shape index: {}]
  %s5 = inlined_call_operand.hbm [shape: bf16[128,128], index: 5, kind: input, shape index: {}]
  %s6 = inlined_call_operand.vmem [shape: f32[1,128], index: 6, kind: input, shape index: {}]
  %s7 = inlined_call_operand.hbm [shape: f32[8,128], index: 7, kind: output, shape index: {}]
  %s8 = sld [smem:[#allocation0]]
  $region54: #{tpu_custom_call.1} parent=0
    _
  %s10 = ssub.s32 1, %s8
  %s11 = scalar_select 0, %s10, %s8
  $region1: #{tpu_custom_call.1} parent=0
    #allocation2 [shape = 'u8[2048]{0}', space=vmem, size = 0x800, scoped, tag = 'input window, operand 0, single buffered']
    #allocation3 [shape = 's32[1]{0}', space=sflag, size = 0x4, scoped, tag = 'scoped memory for tpu_custom_call.1']
    #allocation4 [shape = 's32[1]{0}', space=sflag, size = 0x4, scoped, tag = 'scoped memory for tpu_custom_call.1']
    #allocation5 [shape = 'u8[32768]{0}', space=vmem, size = 0x8000, scoped, tag = 'input window, operand 1, single buffered']
    #allocation6 [shape = 's32[1]{0}', space=sflag, size = 0x4, scoped, tag = 'scoped memory for tpu_custom_call.1']
    #allocation7 [shape = 'u8[204800]{0}', space=vmem, size = 0x32000, scoped, tag = 'input window, operand 4, single buffered']
    #allocation8 [shape = 'u8[32768]{0}', space=vmem, size = 0x8000, scoped, tag = 'input window, operand 5, single buffered']
    #allocation9 [shape = 's32[1]{0}', space=sflag, size = 0x4, scoped, tag = 'scoped memory for tpu_custom_call.1']
    #allocation10 [shape = 'u8[4096]{0}', space=vmem, size = 0x1000, scoped, tag = 'output window, operand 0, single buffered']
    %12 = vsyncpa [#allocation3], 0
    %13 = vsyncpa [#allocation6], 0
    %14 = vsyncpa [#allocation9], 0
    %15 = vsyncpa [#allocation4], 0
    // Predicated region
    $region2: #{tpu_custom_call.1} parent=1 // pred_check
      _
    $region3: #{tpu_custom_call.1} parent=1 // pred_check_branch
      %17 = sbr.rel (0) target = $region5
    $region4: #{tpu_custom_call.1} parent=1 // pred_region
      %s19 = ssub.s32 64, 64
      %20 = vsyncadd [#allocation3], %s19
      %s22 = sshll.u32 [#allocation2], 4
      %s23 = int_to_ptr.vmem [resolvable:$true] %s22
      %25 = dma.hbm_to_vmem [thread:$0]  %s0, 64, %s23, [#allocation3]
    $region5: #{tpu_custom_call.1} parent=1 // pred_fallthru
      _
    // Predicated region
    $region6: #{tpu_custom_call.1} parent=1 // pred_check
      _
    $region7: #{tpu_custom_call.1} parent=1 // pred_check_branch
      %27 = sbr.rel (0) target = $region9
    $region8: #{tpu_custom_call.1} parent=1 // pred_region
      %s29 = ssub.s32 1024, 1024
      %30 = vsyncadd [#allocation6], %s29
      %s31 = sshll.u32 [#allocation5], 4
      %s32 = int_to_ptr.vmem [resolvable:$true] %s31
      %37 = dma.hbm_to_vmem [thread:$0]  %s1, 1024, %s32, [#allocation6], 64, 64, 4
    $region9: #{tpu_custom_call.1} parent=1 // pred_fallthru
      _
    // Predicated region
    $region10: #{tpu_custom_call.1} parent=1 // pred_check
      _
    $region11: #{tpu_custom_call.1} parent=1 // pred_check_branch
      %39 = sbr.rel (0) target = $region13
    $region12: #{tpu_custom_call.1} parent=1 // pred_region
      _
    $region13: #{tpu_custom_call.1} parent=1 // pred_fallthru
      _
    // Predicated region
    $region14: #{tpu_custom_call.1} parent=1 // pred_check
      _
    $region15: #{tpu_custom_call.1} parent=1 // pred_check_branch
      %41 = sbr.rel (0) target = $region17
    $region16: #{tpu_custom_call.1} parent=1 // pred_region
      _
    $region17: #{tpu_custom_call.1} parent=1 // pred_fallthru
      _
    // Predicated region
    $region18: #{tpu_custom_call.1} parent=1 // pred_check
      _
    $region19: #{tpu_custom_call.1} parent=1 // pred_check_branch
      %43 = sbr.rel (0) target = $region21
    $region20: #{tpu_custom_call.1} parent=1 // pred_region
      %s45 = ssub.s32 6400, 6400
      %46 = vsyncadd [#allocation6], %s45
      %s47 = sshll.u32 [#allocation7], 4
      %s48 = int_to_ptr.vmem [resolvable:$true] %s47
      %53 = dma.hbm_to_vmem [thread:$0]  %s4, 6400, %s48, [#allocation6], 128, 128, 8
    $region21: #{tpu_custom_call.1} parent=1 // pred_fallthru
      _
    // Predicated region
    $region22: #{tpu_custom_call.1} parent=1 // pred_check
      _
    $region23: #{tpu_custom_call.1} parent=1 // pred_check_branch
      %55 = sbr.rel (0) target = $region25
    $region24: #{tpu_custom_call.1} parent=1 // pred_region
      %s57 = ssub.s32 1024, 1024
      %58 = vsyncadd [#allocation9], %s57
      %s59 = sshll.u32 [#allocation8], 4
      %s60 = int_to_ptr.vmem [resolvable:$true] %s59
      %65 = dma.hbm_to_vmem [thread:$0]  %s5, 1024, %s60, [#allocation9], 64, 64, 4
    $region25: #{tpu_custom_call.1} parent=1 // pred_fallthru
      _
    // Predicated region
    $region26: #{tpu_custom_call.1} parent=1 // pred_check
      _
    $region27: #{tpu_custom_call.1} parent=1 // pred_check_branch
      %67 = sbr.rel (0) target = $region29
    $region28: #{tpu_custom_call.1} parent=1 // pred_region
      _
    $region29: #{tpu_custom_call.1} parent=1 // pred_fallthru
      _
    // Predicated region
    $region30: #{tpu_custom_call.1} parent=1 // pred_check
      _
    $region31: #{tpu_custom_call.1} parent=1 // pred_check_branch
      %69 = sbr.rel (0) target = $region33
    $region32: #{tpu_custom_call.1} parent=1 // pred_region
      %70 = dma.done [#allocation3], 64
    $region33: #{tpu_custom_call.1} parent=1 // pred_fallthru
      _
    // Predicated region
    $region34: #{tpu_custom_call.1} parent=1 // pred_check
      _
    $region35: #{tpu_custom_call.1} parent=1 // pred_check_branch
      %72 = sbr.rel (0) target = $region37
    $region36: #{tpu_custom_call.1} parent=1 // pred_region
      %73 = dma.done [#allocation6], 1024
    $region37: #{tpu_custom_call.1} parent=1 // pred_fallthru
      _
    // Predicated region
    $region38: #{tpu_custom_call.1} parent=1 // pred_check
      _
    $region39: #{tpu_custom_call.1} parent=1 // pred_check_branch
      %75 = sbr.rel (0) target = $region41
    $region40: #{tpu_custom_call.1} parent=1 // pred_region
      %76 = dma.done [#allocation6], 6400
    $region41: #{tpu_custom_call.1} parent=1 // pred_fallthru
      _
    // Predicated region
    $region42: #{tpu_custom_call.1} parent=1 // pred_check
      _
    $region43: #{tpu_custom_call.1} parent=1 // pred_check_branch
      %78 = sbr.rel (0) target = $region45
    $region44: #{tpu_custom_call.1} parent=1 // pred_region
      %79 = dma.done [#allocation9], 1024
    $region45: #{tpu_custom_call.1} parent=1 // pred_fallthru
      _
    %v81 = vld [vmem:[#allocation2] sm:$0xf]
    %v82 = vld [vmem:[#allocation5] sm:$0xf]
    %v83 = vld [vmem:[#allocation5 + $0x4] sm:$0xf]
    %v84 = vld [vmem:[#allocation5 + $0x8] sm:$0xf]
    %v85 = vld [vmem:[#allocation5 + $0xc] sm:$0xf]
    %v86 = vld [vmem:[#allocation5 + $0x10] sm:$0xf]
    %v87 = vld [vmem:[#allocation5 + $0x14] sm:$0xf]
    %v88 = vld [vmem:[#allocation5 + $0x18] sm:$0xf]
    %v89 = vld [vmem:[#allocation5 + $0x1c] sm:$0xf]
    %v90 = vld [vmem:[#allocation5 + $0x20] sm:$0xf]
    %v91 = vld [vmem:[#allocation5 + $0x24] sm:$0xf]
    %v92 = vld [vmem:[#allocation5 + $0x28] sm:$0xf]
    %v93 = vld [vmem:[#allocation5 + $0x2c] sm:$0xf]
    %v94 = vld [vmem:[#allocation5 + $0x30] sm:$0xf]
    %v95 = vld [vmem:[#allocation5 + $0x34] sm:$0xf]
    %v96 = vld [vmem:[#allocation5 + $0x38] sm:$0xf]
    %v97 = vld [vmem:[#allocation5 + $0x3c] sm:$0xf]
    %v114 = vunpack.c.l.b16 %v82
    %v115 = vunpack.c.l.b16 %v83
    %v116 = vunpack.c.l.b16 %v84
    %v117 = vunpack.c.l.b16 %v85
    %v118 = vunpack.c.l.b16 %v86
    %v119 = vunpack.c.l.b16 %v87
    %v120 = vunpack.c.l.b16 %v88
    %v121 = vunpack.c.l.b16 %v89
    %v122 = vunpack.c.l.b16 %v90
    %v123 = vunpack.c.l.b16 %v91
    %v124 = vunpack.c.l.b16 %v92
    %v125 = vunpack.c.l.b16 %v93
    %v126 = vunpack.c.l.b16 %v94
    %v127 = vunpack.c.l.b16 %v95
    %v128 = vunpack.c.l.b16 %v96
    %v129 = vunpack.c.l.b16 %v97
    %v130 = vpack.c.b16 %v115, %v114
    %v131 = vpack.c.b16 %v117, %v116
    %v132 = vpack.c.b16 %v119, %v118
    %v133 = vpack.c.b16 %v121, %v120
    %v134 = vpack.c.b16 %v123, %v122
    %v135 = vpack.c.b16 %v125, %v124
    %v136 = vpack.c.b16 %v127, %v126
    %v137 = vpack.c.b16 %v129, %v128
    %146 = vmatprep.subr.bf16.mxu0 0
    %147 = vmatpush1.bf16.msra.mxu0 %v130
    %148 = vmatprep.subr.bf16.mxu0 0
    %149 = vmatpush1.bf16.msra.mxu0 %v131
    %150 = vmatprep.subr.bf16.mxu0 0
    %151 = vmatpush1.bf16.msra.mxu0 %v132
    %152 = vmatprep.subr.bf16.mxu0 0
    %153 = vmatpush1.bf16.msra.mxu0 %v133
    %154 = vmatprep.subr.bf16.mxu0 0
    %155 = vmatpush1.bf16.msra.mxu0 %v134
    %156 = vmatprep.subr.bf16.mxu0 0
    %157 = vmatpush1.bf16.msra.mxu0 %v135
    %158 = vmatprep.subr.bf16.mxu0 0
    %159 = vmatpush1.bf16.msra.mxu0 %v136
    %160 = vmatprep.subr.bf16.mxu0 0
    %161 = vmatpush1.bf16.msra.mxu0 %v137
    %162 = vmatprep.subr.bf16.mxu0 0
    %163 = vmatpush1.bf16.msra.mxu0 0
    %164 = vmatprep.subr.bf16.mxu0 0
    %165 = vmatpush1.bf16.msra.mxu0 0
    %166 = vmatprep.subr.bf16.mxu0 0
    %167 = vmatpush1.bf16.msra.mxu0 0
    %168 = vmatprep.subr.bf16.mxu0 0
    %169 = vmatpush1.bf16.msra.mxu0 0
    %170 = vmatprep.subr.bf16.mxu0 0
    %171 = vmatpush1.bf16.msra.mxu0 0
    %172 = vmatprep.subr.bf16.mxu0 0
    %173 = vmatpush1.bf16.msra.mxu0 0
    %174 = vmatprep.subr.bf16.mxu0 0
    %175 = vmatpush1.bf16.msra.mxu0 0
    %176 = vmatprep.subr.bf16.mxu0 0
    %177 = vmatpush1.bf16.msra.mxu0 0
    %178 = vmatprep.mubr.bf16.mxu0 0
    %179 = vmatmul.mubr.bf16.gmra.mrb[0].mxu0 %v81
    %v180 = vpop.f32.mrb[0].mxu0
    %v181 = vadd.f32 0.0, %v180
    %v182 = vpop.f32.mrb[0].mxu0
    %v183 = vpop.f32.mrb[0].mxu0
    %v184 = vpop.f32.mrb[0].mxu0
    %185 = vdwg.mxu0
    %v186 = vld [vmem:[%s2] sm:$0x1]
    %v188 = vlaneseq
    %v189 = vshrl.u32 %v188, 7
    %v190 = vsub.s32 0, %v189
    %v191 = vrot.slane %v186, %v190
    %v193 = vmul.f32 %v181, %v191
    %v194 = vld [vmem:[%s3] sm:$0x1]
    %v196 = vlaneseq
    %v197 = vshrl.u32 %v196, 7
    %v198 = vsub.s32 0, %v197
    %v199 = vrot.slane %v194, %v198
    %v201 = vadd.f32 %v193, %v199
    %v202 = vmax.f32 %v201, 0.0
    %v203 = vld [vmem:[#allocation7] sm:$0xff]
    %v204 = vld [vmem:[#allocation7 + $0x8] sm:$0xff]
    %v205 = vld [vmem:[#allocation7 + $0x10] sm:$0xff]
    %v206 = vld [vmem:[#allocation7 + $0x18] sm:$0xff]
    %v207 = vld [vmem:[#allocation7 + $0x20] sm:$0xff]
    %v208 = vld [vmem:[#allocation7 + $0x28] sm:$0xff]
    %v209 = vld [vmem:[#allocation7 + $0x30] sm:$0xff]
    %v210 = vld [vmem:[#allocation7 + $0x38] sm:$0xff]
    %v211 = vld [vmem:[#allocation7 + $0x40] sm:$0xff]
    %v212 = vld [vmem:[#allocation7 + $0x48] sm:$0xff]
    %v213 = vld [vmem:[#allocation7 + $0x50] sm:$0xff]
    %v214 = vld [vmem:[#allocation7 + $0x58] sm:$0xff]
    %v215 = vld [vmem:[#allocation7 + $0x60] sm:$0xff]
    %v216 = vld [vmem:[#allocation7 + $0x68] sm:$0xff]
    %v217 = vld [vmem:[#allocation7 + $0x70] sm:$0xff]
    %v218 = vld [vmem:[#allocation7 + $0x78] sm:$0xff]
    %v219 = vld [vmem:[#allocation7 + $0x80] sm:$0xff]
    %v220 = vld [vmem:[#allocation7 + $0x88] sm:$0xff]
    %v221 = vld [vmem:[#allocation7 + $0x90] sm:$0xff]
    %v222 = vld [vmem:[#allocation7 + $0x98] sm:$0xff]
    %v223 = vld [vmem:[#allocation7 + $0xa0] sm:$0xff]
    %v224 = vld [vmem:[#allocation7 + $0xa8] sm:$0xff]
    %v225 = vld [vmem:[#allocation7 + $0xb0] sm:$0xff]
    %v226 = vld [vmem:[#allocation7 + $0xb8] sm:$0xff]
    %v227 = vld [vmem:[#allocation7 + $0xc0] sm:$0xff]
    %v228 = vld [vmem:[#allocation7 + $0xc8] sm:$0xff]
    %v229 = vld [vmem:[#allocation7 + $0xd0] sm:$0xff]
    %v230 = vld [vmem:[#allocation7 + $0xd8] sm:$0xff]
    %v231 = vld [vmem:[#allocation7 + $0xe0] sm:$0xff]
    %v232 = vld [vmem:[#allocation7 + $0xe8] sm:$0xff]
    %v233 = vld [vmem:[#allocation7 + $0xf0] sm:$0xff]
    %v234 = vld [vmem:[#allocation7 + $0xf8] sm:$0xff]
    %v235 = vld [vmem:[#allocation7 + $0x100] sm:$0xff]
    %v236 = vld [vmem:[#allocation7 + $0x108] sm:$0xff]
    %v237 = vld [vmem:[#allocation7 + $0x110] sm:$0xff]
    %v238 = vld [vmem:[#allocation7 + $0x118] sm:$0xff]
    %v239 = vld [vmem:[#allocation7 + $0x120] sm:$0xff]
    %v240 = vld [vmem:[#allocation7 + $0x128] sm:$0xff]
    %v241 = vld [vmem:[#allocation7 + $0x130] sm:$0xff]
    %v242 = vld [vmem:[#allocation7 + $0x138] sm:$0xff]
    %v243 = vld [vmem:[#allocation7 + $0x140] sm:$0xff]
    %v244 = vld [vmem:[#allocation7 + $0x148] sm:$0xff]
    %v245 = vld [vmem:[#allocation7 + $0x150] sm:$0xff]
    %v246 = vld [vmem:[#allocation7 + $0x158] sm:$0xff]
    %v247 = vld [vmem:[#allocation7 + $0x160] sm:$0xff]
    %v248 = vld [vmem:[#allocation7 + $0x168] sm:$0xff]
    %v249 = vld [vmem:[#allocation7 + $0x170] sm:$0xff]
    %v250 = vld [vmem:[#allocation7 + $0x178] sm:$0xff]
    %v251 = vld [vmem:[#allocation7 + $0x180] sm:$0xff]
    %v252 = vld [vmem:[#allocation7 + $0x188] sm:$0xff]
    %v253 = vmul.f32 %v203, %v202
    %v254 = vmul.f32 %v204, %v202
    %v255 = vmul.f32 %v205, %v202
    %v256 = vmul.f32 %v206, %v202
    %v257 = vmul.f32 %v207, %v202
    %v258 = vmul.f32 %v208, %v202
    %v259 = vmul.f32 %v209, %v202
    %v260 = vmul.f32 %v210, %v202
    %v261 = vmul.f32 %v211, %v202
    %v262 = vmul.f32 %v212, %v202
    %v263 = vmul.f32 %v213, %v202
    %v264 = vmul.f32 %v214, %v202
    %v265 = vmul.f32 %v215, %v202
    %v266 = vmul.f32 %v216, %v202
    %v267 = vmul.f32 %v217, %v202
    %v268 = vmul.f32 %v218, %v202
    %v269 = vmul.f32 %v219, %v202
    %v270 = vmul.f32 %v220, %v202
    %v271 = vmul.f32 %v221, %v202
    %v272 = vmul.f32 %v222, %v202
    %v273 = vmul.f32 %v223, %v202
    %v274 = vmul.f32 %v224, %v202
    %v275 = vmul.f32 %v225, %v202
    %v276 = vmul.f32 %v226, %v202
    %v277 = vmul.f32 %v227, %v202
    %v278 = vmul.f32 %v228, %v202
    %v279 = vmul.f32 %v229, %v202
    %v280 = vmul.f32 %v230, %v202
    %v281 = vmul.f32 %v231, %v202
    %v282 = vmul.f32 %v232, %v202
    %v283 = vmul.f32 %v233, %v202
    %v284 = vmul.f32 %v234, %v202
    %v285 = vmul.f32 %v235, %v202
    %v286 = vmul.f32 %v236, %v202
    %v287 = vmul.f32 %v237, %v202
    %v288 = vmul.f32 %v238, %v202
    %v289 = vmul.f32 %v239, %v202
    %v290 = vmul.f32 %v240, %v202
    %v291 = vmul.f32 %v241, %v202
    %v292 = vmul.f32 %v242, %v202
    %v293 = vmul.f32 %v243, %v202
    %v294 = vmul.f32 %v244, %v202
    %v295 = vmul.f32 %v245, %v202
    %v296 = vmul.f32 %v246, %v202
    %v297 = vmul.f32 %v247, %v202
    %v298 = vmul.f32 %v248, %v202
    %v299 = vmul.f32 %v249, %v202
    %v300 = vmul.f32 %v250, %v202
    %v301 = vmul.f32 %v251, %v202
    %v302 = vmul.f32 %v252, %v202
    %v303 = vpack.c.bf16 %v254, %v253
    %v304 = vpack.c.bf16 %v256, %v255
    %v305 = vpack.c.bf16 %v258, %v257
    %v306 = vpack.c.bf16 %v260, %v259
    %v307 = vpack.c.bf16 %v262, %v261
    %v308 = vpack.c.bf16 %v264, %v263
    %v309 = vpack.c.bf16 %v266, %v265
    %v310 = vpack.c.bf16 %v268, %v267
    %v311 = vpack.c.bf16 %v270, %v269
    %v312 = vpack.c.bf16 %v272, %v271
    %v313 = vpack.c.bf16 %v274, %v273
    %v314 = vpack.c.bf16 %v276, %v275
    %v315 = vpack.c.bf16 %v278, %v277
    %v316 = vpack.c.bf16 %v280, %v279
    %v317 = vpack.c.bf16 %v282, %v281
    %v318 = vpack.c.bf16 %v284, %v283
    %v319 = vpack.c.bf16 %v286, %v285
    %v320 = vpack.c.bf16 %v288, %v287
    %v321 = vpack.c.bf16 %v290, %v289
    %v322 = vpack.c.bf16 %v292, %v291
    %v323 = vpack.c.bf16 %v294, %v293
    %v324 = vpack.c.bf16 %v296, %v295
    %v325 = vpack.c.bf16 %v298, %v297
    %v326 = vpack.c.bf16 %v300, %v299
    %v327 = vpack.c.bf16 %v302, %v301
    %v328 = vld [vmem:[#allocation8] sm:$0xf]
    %v329 = vld [vmem:[#allocation8 + $0x4] sm:$0xf]
    %v330 = vld [vmem:[#allocation8 + $0x8] sm:$0xf]
    %v331 = vld [vmem:[#allocation8 + $0xc] sm:$0xf]
    %v332 = vld [vmem:[#allocation8 + $0x10] sm:$0xf]
    %v333 = vld [vmem:[#allocation8 + $0x14] sm:$0xf]
    %v334 = vld [vmem:[#allocation8 + $0x18] sm:$0xf]
    %v335 = vld [vmem:[#allocation8 + $0x1c] sm:$0xf]
    %v336 = vld [vmem:[#allocation8 + $0x20] sm:$0xf]
    %v337 = vld [vmem:[#allocation8 + $0x24] sm:$0xf]
    %v338 = vld [vmem:[#allocation8 + $0x28] sm:$0xf]
    %v339 = vld [vmem:[#allocation8 + $0x2c] sm:$0xf]
    %v340 = vld [vmem:[#allocation8 + $0x30] sm:$0xf]
    %v341 = vld [vmem:[#allocation8 + $0x34] sm:$0xf]
    %v342 = vld [vmem:[#allocation8 + $0x38] sm:$0xf]
    %v343 = vld [vmem:[#allocation8 + $0x3c] sm:$0xf]
    %v344 = vld [vmem:[%s6] sm:$0x1]
    %v346 = vlaneseq
    %v347 = vshrl.u32 %v346, 7
    %v348 = vsub.s32 0, %v347
    %v349 = vrot.slane %v344, %v348
    %v367 = vunpack.c.l.b16 %v328
    %v368 = vunpack.c.l.b16 %v329
    %v369 = vunpack.c.l.b16 %v330
    %v370 = vunpack.c.l.b16 %v331
    %v371 = vunpack.c.l.b16 %v332
    %v372 = vunpack.c.l.b16 %v333
    %v373 = vunpack.c.l.b16 %v334
    %v374 = vunpack.c.l.b16 %v335
    %v375 = vunpack.c.l.b16 %v336
    %v376 = vunpack.c.l.b16 %v337
    %v377 = vunpack.c.l.b16 %v338
    %v378 = vunpack.c.l.b16 %v339
    %v379 = vunpack.c.l.b16 %v340
    %v380 = vunpack.c.l.b16 %v341
    %v381 = vunpack.c.l.b16 %v342
    %v382 = vunpack.c.l.b16 %v343
    %v383 = vpack.c.b16 %v368, %v367
    %v384 = vpack.c.b16 %v370, %v369
    %v385 = vpack.c.b16 %v372, %v371
    %v386 = vpack.c.b16 %v374, %v373
    %v387 = vpack.c.b16 %v376, %v375
    %v388 = vpack.c.b16 %v378, %v377
    %v389 = vpack.c.b16 %v380, %v379
    %v390 = vpack.c.b16 %v382, %v381
    %399 = vmatprep.subr.bf16.mxu0 0
    %400 = vmatpush1.bf16.msra.mxu0 %v383
    %401 = vmatprep.subr.bf16.mxu0 0
    %402 = vmatpush1.bf16.msra.mxu0 %v384
    %403 = vmatprep.subr.bf16.mxu0 0
    %404 = vmatpush1.bf16.msra.mxu0 %v385
    %405 = vmatprep.subr.bf16.mxu0 0
    %406 = vmatpush1.bf16.msra.mxu0 %v386
    %407 = vmatprep.subr.bf16.mxu0 0
    %408 = vmatpush1.bf16.msra.mxu0 %v387
    %409 = vmatprep.subr.bf16.mxu0 0
    %410 = vmatpush1.bf16.msra.mxu0 %v388
    %411 = vmatprep.subr.bf16.mxu0 0
    %412 = vmatpush1.bf16.msra.mxu0 %v389
    %413 = vmatprep.subr.bf16.mxu0 0
    %414 = vmatpush1.bf16.msra.mxu0 %v390
    %415 = vmatprep.subr.bf16.mxu0 0
    %416 = vmatpush1.bf16.msra.mxu0 0
    %417 = vmatprep.subr.bf16.mxu0 0
    %418 = vmatpush1.bf16.msra.mxu0 0
    %419 = vmatprep.subr.bf16.mxu0 0
    %420 = vmatpush1.bf16.msra.mxu0 0
    %421 = vmatprep.subr.bf16.mxu0 0
    %422 = vmatpush1.bf16.msra.mxu0 0
    %423 = vmatprep.subr.bf16.mxu0 0
    %424 = vmatpush1.bf16.msra.mxu0 0
    %425 = vmatprep.subr.bf16.mxu0 0
    %426 = vmatpush1.bf16.msra.mxu0 0
    %427 = vmatprep.subr.bf16.mxu0 0
    %428 = vmatpush1.bf16.msra.mxu0 0
    %429 = vmatprep.subr.bf16.mxu0 0
    %430 = vmatpush1.bf16.msra.mxu0 0
    %431 = vmatprep.mubr.bf16.mxu0 0
    %432 = vmatmul.mubr.bf16.gmra.mrb[0].mxu0 %v303
    %v433 = vpop.f32.mrb[0].mxu0
    %v434 = vadd.f32 %v349, %v433
    %v435 = vpop.f32.mrb[0].mxu0
    %v436 = vpop.f32.mrb[0].mxu0
    %v437 = vadd.f32 %v349, %v436
    %v438 = vpop.f32.mrb[0].mxu0
    %439 = vmatprep.mubr.bf16.mxu0 0
    %440 = vmatmul.mubr.bf16.gmra.mrb[0].mxu0 %v304
    %v441 = vpop.f32.mrb[0].mxu0
    %v442 = vadd.f32 %v349, %v441
    %v443 = vpop.f32.mrb[0].mxu0
    %v444 = vpop.f32.mrb[0].mxu0
    %v445 = vadd.f32 %v349, %v444
    %v446 = vpop.f32.mrb[0].mxu0
    %447 = vmatprep.mubr.bf16.mxu0 0
    %448 = vmatmul.mubr.bf16.gmra.mrb[0].mxu0 %v305
    %v449 = vpop.f32.mrb[0].mxu0
    %v450 = vadd.f32 %v349, %v449
    %v451 = vpop.f32.mrb[0].mxu0
    %v452 = vpop.f32.mrb[0].mxu0
    %v453 = vadd.f32 %v349, %v452
    %v454 = vpop.f32.mrb[0].mxu0
    %455 = vmatprep.mubr.bf16.mxu0 0
    %456 = vmatmul.mubr.bf16.gmra.mrb[0].mxu0 %v306
    %v457 = vpop.f32.mrb[0].mxu0
    %v458 = vadd.f32 %v349, %v457
    %v459 = vpop.f32.mrb[0].mxu0
    %v460 = vpop.f32.mrb[0].mxu0
    %v461 = vadd.f32 %v349, %v460
    %v462 = vpop.f32.mrb[0].mxu0
    %463 = vmatprep.mubr.bf16.mxu0 0
    %464 = vmatmul.mubr.bf16.gmra.mrb[0].mxu0 %v307
    %v465 = vpop.f32.mrb[0].mxu0
    %v466 = vadd.f32 %v349, %v465
    %v467 = vpop.f32.mrb[0].mxu0
    %v468 = vpop.f32.mrb[0].mxu0
    %v469 = vadd.f32 %v349, %v468
    %v470 = vpop.f32.mrb[0].mxu0
    %471 = vmatprep.mubr.bf16.mxu0 0
    %472 = vmatmul.mubr.bf16.gmra.mrb[0].mxu0 %v308
    %v473 = vpop.f32.mrb[0].mxu0
    %v474 = vadd.f32 %v349, %v473
    %v475 = vpop.f32.mrb[0].mxu0
    %v476 = vpop.f32.mrb[0].mxu0
    %v477 = vadd.f32 %v349, %v476
    %v478 = vpop.f32.mrb[0].mxu0
    %479 = vmatprep.mubr.bf16.mxu0 0
    %480 = vmatmul.mubr.bf16.gmra.mrb[0].mxu0 %v309
    %v481 = vpop.f32.mrb[0].mxu0
    %v482 = vadd.f32 %v349, %v481
    %v483 = vpop.f32.mrb[0].mxu0
    %v484 = vpop.f32.mrb[0].mxu0
    %v485 = vadd.f32 %v349, %v484
    %v486 = vpop.f32.mrb[0].mxu0
    %487 = vmatprep.mubr.bf16.mxu0 0
    %488 = vmatmul.mubr.bf16.gmra.mrb[0].mxu0 %v310
    %v489 = vpop.f32.mrb[0].mxu0
    %v490 = vadd.f32 %v349, %v489
    %v491 = vpop.f32.mrb[0].mxu0
    %v492 = vpop.f32.mrb[0].mxu0
    %v493 = vadd.f32 %v349, %v492
    %v494 = vpop.f32.mrb[0].mxu0
    %495 = vmatprep.mubr.bf16.mxu0 0
    %496 = vmatmul.mubr.bf16.gmra.mrb[0].mxu0 %v311
    %v497 = vpop.f32.mrb[0].mxu0
    %v498 = vadd.f32 %v349, %v497
    %v499 = vpop.f32.mrb[0].mxu0
    %v500 = vpop.f32.mrb[0].mxu0
    %v501 = vadd.f32 %v349, %v500
    %v502 = vpop.f32.mrb[0].mxu0
    %503 = vmatprep.mubr.bf16.mxu0 0
    %504 = vmatmul.mubr.bf16.gmra.mrb[0].mxu0 %v312
    %v505 = vpop.f32.mrb[0].mxu0
    %v506 = vadd.f32 %v349, %v505
    %v507 = vpop.f32.mrb[0].mxu0
    %v508 = vpop.f32.mrb[0].mxu0
    %v509 = vadd.f32 %v349, %v508
    %v510 = vpop.f32.mrb[0].mxu0
    %511 = vmatprep.mubr.bf16.mxu0 0
    %512 = vmatmul.mubr.bf16.gmra.mrb[0].mxu0 %v313
    %v513 = vpop.f32.mrb[0].mxu0
    %v514 = vadd.f32 %v349, %v513
    %v515 = vpop.f32.mrb[0].mxu0
    %v516 = vpop.f32.mrb[0].mxu0
    %v517 = vadd.f32 %v349, %v516
    %v518 = vpop.f32.mrb[0].mxu0
    %519 = vmatprep.mubr.bf16.mxu0 0
    %520 = vmatmul.mubr.bf16.gmra.mrb[0].mxu0 %v314
    %v521 = vpop.f32.mrb[0].mxu0
    %v522 = vadd.f32 %v349, %v521
    %v523 = vpop.f32.mrb[0].mxu0
    %v524 = vpop.f32.mrb[0].mxu0
    %v525 = vadd.f32 %v349, %v524
    %v526 = vpop.f32.mrb[0].mxu0
    %527 = vmatprep.mubr.bf16.mxu0 0
    %528 = vmatmul.mubr.bf16.gmra.mrb[0].mxu0 %v315
    %v529 = vpop.f32.mrb[0].mxu0
    %v530 = vadd.f32 %v349, %v529
    %v531 = vpop.f32.mrb[0].mxu0
    %v532 = vpop.f32.mrb[0].mxu0
    %v533 = vadd.f32 %v349, %v532
    %v534 = vpop.f32.mrb[0].mxu0
    %535 = vmatprep.mubr.bf16.mxu0 0
    %536 = vmatmul.mubr.bf16.gmra.mrb[0].mxu0 %v316
    %v537 = vpop.f32.mrb[0].mxu0
    %v538 = vadd.f32 %v349, %v537
    %v539 = vpop.f32.mrb[0].mxu0
    %v540 = vpop.f32.mrb[0].mxu0
    %v541 = vadd.f32 %v349, %v540
    %v542 = vpop.f32.mrb[0].mxu0
    %543 = vmatprep.mubr.bf16.mxu0 0
    %544 = vmatmul.mubr.bf16.gmra.mrb[0].mxu0 %v317
    %v545 = vpop.f32.mrb[0].mxu0
    %v546 = vadd.f32 %v349, %v545
    %v547 = vpop.f32.mrb[0].mxu0
    %v548 = vpop.f32.mrb[0].mxu0
    %v549 = vadd.f32 %v349, %v548
    %v550 = vpop.f32.mrb[0].mxu0
    %551 = vmatprep.mubr.bf16.mxu0 0
    %552 = vmatmul.mubr.bf16.gmra.mrb[0].mxu0 %v318
    %v553 = vpop.f32.mrb[0].mxu0
    %v554 = vadd.f32 %v349, %v553
    %v555 = vpop.f32.mrb[0].mxu0
    %v556 = vpop.f32.mrb[0].mxu0
    %v557 = vadd.f32 %v349, %v556
    %v558 = vpop.f32.mrb[0].mxu0
    %559 = vmatprep.mubr.bf16.mxu0 0
    %560 = vmatmul.mubr.bf16.gmra.mrb[0].mxu0 %v319
    %v561 = vpop.f32.mrb[0].mxu0
    %v562 = vadd.f32 %v349, %v561
    %v563 = vpop.f32.mrb[0].mxu0
    %v564 = vpop.f32.mrb[0].mxu0
    %v565 = vadd.f32 %v349, %v564
    %v566 = vpop.f32.mrb[0].mxu0
    %567 = vmatprep.mubr.bf16.mxu0 0
    %568 = vmatmul.mubr.bf16.gmra.mrb[0].mxu0 %v320
    %v569 = vpop.f32.mrb[0].mxu0
    %v570 = vadd.f32 %v349, %v569
    %v571 = vpop.f32.mrb[0].mxu0
    %v572 = vpop.f32.mrb[0].mxu0
    %v573 = vadd.f32 %v349, %v572
    %v574 = vpop.f32.mrb[0].mxu0
    %575 = vmatprep.mubr.bf16.mxu0 0
    %576 = vmatmul.mubr.bf16.gmra.mrb[0].mxu0 %v321
    %v577 = vpop.f32.mrb[0].mxu0
    %v578 = vadd.f32 %v349, %v577
    %v579 = vpop.f32.mrb[0].mxu0
    %v580 = vpop.f32.mrb[0].mxu0
    %v581 = vadd.f32 %v349, %v580
    %v582 = vpop.f32.mrb[0].mxu0
    %583 = vmatprep.mubr.bf16.mxu0 0
    %584 = vmatmul.mubr.bf16.gmra.mrb[0].mxu0 %v322
    %v585 = vpop.f32.mrb[0].mxu0
    %v586 = vadd.f32 %v349, %v585
    %v587 = vpop.f32.mrb[0].mxu0
    %v588 = vpop.f32.mrb[0].mxu0
    %v589 = vadd.f32 %v349, %v588
    %v590 = vpop.f32.mrb[0].mxu0
    %591 = vmatprep.mubr.bf16.mxu0 0
    %592 = vmatmul.mubr.bf16.gmra.mrb[0].mxu0 %v323
    %v593 = vpop.f32.mrb[0].mxu0
    %v594 = vadd.f32 %v349, %v593
    %v595 = vpop.f32.mrb[0].mxu0
    %v596 = vpop.f32.mrb[0].mxu0
    %v597 = vadd.f32 %v349, %v596
    %v598 = vpop.f32.mrb[0].mxu0
    %599 = vmatprep.mubr.bf16.mxu0 0
    %600 = vmatmul.mubr.bf16.gmra.mrb[0].mxu0 %v324
    %v601 = vpop.f32.mrb[0].mxu0
    %v602 = vadd.f32 %v349, %v601
    %v603 = vpop.f32.mrb[0].mxu0
    %v604 = vpop.f32.mrb[0].mxu0
    %v605 = vadd.f32 %v349, %v604
    %v606 = vpop.f32.mrb[0].mxu0
    %607 = vmatprep.mubr.bf16.mxu0 0
    %608 = vmatmul.mubr.bf16.gmra.mrb[0].mxu0 %v325
    %v609 = vpop.f32.mrb[0].mxu0
    %v610 = vadd.f32 %v349, %v609
    %v611 = vpop.f32.mrb[0].mxu0
    %v612 = vpop.f32.mrb[0].mxu0
    %v613 = vadd.f32 %v349, %v612
    %v614 = vpop.f32.mrb[0].mxu0
    %615 = vmatprep.mubr.bf16.mxu0 0
    %616 = vmatmul.mubr.bf16.gmra.mrb[0].mxu0 %v326
    %v617 = vpop.f32.mrb[0].mxu0
    %v618 = vadd.f32 %v349, %v617
    %v619 = vpop.f32.mrb[0].mxu0
    %v620 = vpop.f32.mrb[0].mxu0
    %v621 = vadd.f32 %v349, %v620
    %v622 = vpop.f32.mrb[0].mxu0
    %623 = vmatprep.mubr.bf16.mxu0 0
    %624 = vmatmul.mubr.bf16.gmra.mrb[0].mxu0 %v327
    %v625 = vpop.f32.mrb[0].mxu0
    %v626 = vadd.f32 %v349, %v625
    %v627 = vpop.f32.mrb[0].mxu0
    %v628 = vpop.f32.mrb[0].mxu0
    %v629 = vadd.f32 %v349, %v628
    %v630 = vpop.f32.mrb[0].mxu0
    %631 = vdwg.mxu0
    %632 = vmax.xlane.f32.xlu0 %v434
    %v633 = vpop.xlane.xlu0 %632
    %634 = vmax.xlane.f32.xlu0 %v437
    %v635 = vpop.xlane.xlu0 %634
    %636 = vmax.xlane.f32.xlu0 %v442
    %v637 = vpop.xlane.xlu0 %636
    %638 = vmax.xlane.f32.xlu0 %v445
    %v639 = vpop.xlane.xlu0 %638
    %640 = vmax.xlane.f32.xlu0 %v450
    %v641 = vpop.xlane.xlu0 %640
    %642 = vmax.xlane.f32.xlu0 %v453
    %v643 = vpop.xlane.xlu0 %642
    %644 = vmax.xlane.f32.xlu0 %v458
    %v645 = vpop.xlane.xlu0 %644
    %646 = vmax.xlane.f32.xlu0 %v461
    %v647 = vpop.xlane.xlu0 %646
    %648 = vmax.xlane.f32.xlu0 %v466
    %v649 = vpop.xlane.xlu0 %648
    %650 = vmax.xlane.f32.xlu0 %v469
    %v651 = vpop.xlane.xlu0 %650
    %652 = vmax.xlane.f32.xlu0 %v474
    %v653 = vpop.xlane.xlu0 %652
    %654 = vmax.xlane.f32.xlu0 %v477
    %v655 = vpop.xlane.xlu0 %654
    %656 = vmax.xlane.f32.xlu0 %v482
    %v657 = vpop.xlane.xlu0 %656
    %658 = vmax.xlane.f32.xlu0 %v485
    %v659 = vpop.xlane.xlu0 %658
    %660 = vmax.xlane.f32.xlu0 %v490
    %v661 = vpop.xlane.xlu0 %660
    %662 = vmax.xlane.f32.xlu0 %v493
    %v663 = vpop.xlane.xlu0 %662
    %664 = vmax.xlane.f32.xlu0 %v498
    %v665 = vpop.xlane.xlu0 %664
    %666 = vmax.xlane.f32.xlu0 %v501
    %v667 = vpop.xlane.xlu0 %666
    %668 = vmax.xlane.f32.xlu0 %v506
    %v669 = vpop.xlane.xlu0 %668
    %670 = vmax.xlane.f32.xlu0 %v509
    %v671 = vpop.xlane.xlu0 %670
    %672 = vmax.xlane.f32.xlu0 %v514
    %v673 = vpop.xlane.xlu0 %672
    %674 = vmax.xlane.f32.xlu0 %v517
    %v675 = vpop.xlane.xlu0 %674
    %676 = vmax.xlane.f32.xlu0 %v522
    %v677 = vpop.xlane.xlu0 %676
    %678 = vmax.xlane.f32.xlu0 %v525
    %v679 = vpop.xlane.xlu0 %678
    %680 = vmax.xlane.f32.xlu0 %v530
    %v681 = vpop.xlane.xlu0 %680
    %682 = vmax.xlane.f32.xlu0 %v533
    %v683 = vpop.xlane.xlu0 %682
    %684 = vmax.xlane.f32.xlu0 %v538
    %v685 = vpop.xlane.xlu0 %684
    %686 = vmax.xlane.f32.xlu0 %v541
    %v687 = vpop.xlane.xlu0 %686
    %688 = vmax.xlane.f32.xlu0 %v546
    %v689 = vpop.xlane.xlu0 %688
    %690 = vmax.xlane.f32.xlu0 %v549
    %v691 = vpop.xlane.xlu0 %690
    %692 = vmax.xlane.f32.xlu0 %v554
    %v693 = vpop.xlane.xlu0 %692
    %694 = vmax.xlane.f32.xlu0 %v557
    %v695 = vpop.xlane.xlu0 %694
    %696 = vmax.xlane.f32.xlu0 %v562
    %v697 = vpop.xlane.xlu0 %696
    %698 = vmax.xlane.f32.xlu0 %v565
    %v699 = vpop.xlane.xlu0 %698
    %700 = vmax.xlane.f32.xlu0 %v570
    %v701 = vpop.xlane.xlu0 %700
    %702 = vmax.xlane.f32.xlu0 %v573
    %v703 = vpop.xlane.xlu0 %702
    %704 = vmax.xlane.f32.xlu0 %v578
    %v705 = vpop.xlane.xlu0 %704
    %706 = vmax.xlane.f32.xlu0 %v581
    %v707 = vpop.xlane.xlu0 %706
    %708 = vmax.xlane.f32.xlu0 %v586
    %v709 = vpop.xlane.xlu0 %708
    %710 = vmax.xlane.f32.xlu0 %v589
    %v711 = vpop.xlane.xlu0 %710
    %712 = vmax.xlane.f32.xlu0 %v594
    %v713 = vpop.xlane.xlu0 %712
    %714 = vmax.xlane.f32.xlu0 %v597
    %v715 = vpop.xlane.xlu0 %714
    %716 = vmax.xlane.f32.xlu0 %v602
    %v717 = vpop.xlane.xlu0 %716
    %718 = vmax.xlane.f32.xlu0 %v605
    %v719 = vpop.xlane.xlu0 %718
    %720 = vmax.xlane.f32.xlu0 %v610
    %v721 = vpop.xlane.xlu0 %720
    %722 = vmax.xlane.f32.xlu0 %v613
    %v723 = vpop.xlane.xlu0 %722
    %724 = vmax.xlane.f32.xlu0 %v618
    %v725 = vpop.xlane.xlu0 %724
    %726 = vmax.xlane.f32.xlu0 %v621
    %v727 = vpop.xlane.xlu0 %726
    %728 = vmax.xlane.f32.xlu0 %v626
    %v729 = vpop.xlane.xlu0 %728
    %730 = vmax.xlane.f32.xlu0 %v629
    %v731 = vpop.xlane.xlu0 %730
    %v732 = vsub.f32 %v434, %v633
    %v733 = vsub.f32 %v437, %v635
    %v734 = vsub.f32 %v442, %v637
    %v735 = vsub.f32 %v445, %v639
    %v736 = vsub.f32 %v450, %v641
    %v737 = vsub.f32 %v453, %v643
    %v738 = vsub.f32 %v458, %v645
    %v739 = vsub.f32 %v461, %v647
    %v740 = vsub.f32 %v466, %v649
    %v741 = vsub.f32 %v469, %v651
    %v742 = vsub.f32 %v474, %v653
    %v743 = vsub.f32 %v477, %v655
    %v744 = vsub.f32 %v482, %v657
    %v745 = vsub.f32 %v485, %v659
    %v746 = vsub.f32 %v490, %v661
    %v747 = vsub.f32 %v493, %v663
    %v748 = vsub.f32 %v498, %v665
    %v749 = vsub.f32 %v501, %v667
    %v750 = vsub.f32 %v506, %v669
    %v751 = vsub.f32 %v509, %v671
    %v752 = vsub.f32 %v514, %v673
    %v753 = vsub.f32 %v517, %v675
    %v754 = vsub.f32 %v522, %v677
    %v755 = vsub.f32 %v525, %v679
    %v756 = vsub.f32 %v530, %v681
    %v757 = vsub.f32 %v533, %v683
    %v758 = vsub.f32 %v538, %v685
    %v759 = vsub.f32 %v541, %v687
    %v760 = vsub.f32 %v546, %v689
    %v761 = vsub.f32 %v549, %v691
    %v762 = vsub.f32 %v554, %v693
    %v763 = vsub.f32 %v557, %v695
    %v764 = vsub.f32 %v562, %v697
    %v765 = vsub.f32 %v565, %v699
    %v766 = vsub.f32 %v570, %v701
    %v767 = vsub.f32 %v573, %v703
    %v768 = vsub.f32 %v578, %v705
    %v769 = vsub.f32 %v581, %v707
    %v770 = vsub.f32 %v586, %v709
    %v771 = vsub.f32 %v589, %v711
    %v772 = vsub.f32 %v594, %v713
    %v773 = vsub.f32 %v597, %v715
    %v774 = vsub.f32 %v602, %v717
    %v775 = vsub.f32 %v605, %v719
    %v776 = vsub.f32 %v610, %v721
    %v777 = vsub.f32 %v613, %v723
    %v778 = vsub.f32 %v618, %v725
    %v779 = vsub.f32 %v621, %v727
    %v780 = vsub.f32 %v626, %v729
    %v781 = vsub.f32 %v629, %v731
    %v782 = vmul.f32 %v732, 1.442695
    %v783 = vpow.pop %v782
    %v784 = vmul.f32 %v733, 1.442695
    %v785 = vpow.pop %v784
    %v786 = vmul.f32 %v734, 1.442695
    %v787 = vpow.pop %v786
    %v788 = vmul.f32 %v735, 1.442695
    %v789 = vpow.pop %v788
    %v790 = vmul.f32 %v736, 1.442695
    %v791 = vpow.pop %v790
    %v792 = vmul.f32 %v737, 1.442695
    %v793 = vpow.pop %v792
    %v794 = vmul.f32 %v738, 1.442695
    %v795 = vpow.pop %v794
    %v796 = vmul.f32 %v739, 1.442695
    %v797 = vpow.pop %v796
    %v798 = vmul.f32 %v740, 1.442695
    %v799 = vpow.pop %v798
    %v800 = vmul.f32 %v741, 1.442695
    %v801 = vpow.pop %v800
    %v802 = vmul.f32 %v742, 1.442695
    %v803 = vpow.pop %v802
    %v804 = vmul.f32 %v743, 1.442695
    %v805 = vpow.pop %v804
    %v806 = vmul.f32 %v744, 1.442695
    %v807 = vpow.pop %v806
    %v808 = vmul.f32 %v745, 1.442695
    %v809 = vpow.pop %v808
    %v810 = vmul.f32 %v746, 1.442695
    %v811 = vpow.pop %v810
    %v812 = vmul.f32 %v747, 1.442695
    %v813 = vpow.pop %v812
    %v814 = vmul.f32 %v748, 1.442695
    %v815 = vpow.pop %v814
    %v816 = vmul.f32 %v749, 1.442695
    %v817 = vpow.pop %v816
    %v818 = vmul.f32 %v750, 1.442695
    %v819 = vpow.pop %v818
    %v820 = vmul.f32 %v751, 1.442695
    %v821 = vpow.pop %v820
    %v822 = vmul.f32 %v752, 1.442695
    %v823 = vpow.pop %v822
    %v824 = vmul.f32 %v753, 1.442695
    %v825 = vpow.pop %v824
    %v826 = vmul.f32 %v754, 1.442695
    %v827 = vpow.pop %v826
    %v828 = vmul.f32 %v755, 1.442695
    %v829 = vpow.pop %v828
    %v830 = vmul.f32 %v756, 1.442695
    %v831 = vpow.pop %v830
    %v832 = vmul.f32 %v757, 1.442695
    %v833 = vpow.pop %v832
    %v834 = vmul.f32 %v758, 1.442695
    %v835 = vpow.pop %v834
    %v836 = vmul.f32 %v759, 1.442695
    %v837 = vpow.pop %v836
    %v838 = vmul.f32 %v760, 1.442695
    %v839 = vpow.pop %v838
    %v840 = vmul.f32 %v761, 1.442695
    %v841 = vpow.pop %v840
    %v842 = vmul.f32 %v762, 1.442695
    %v843 = vpow.pop %v842
    %v844 = vmul.f32 %v763, 1.442695
    %v845 = vpow.pop %v844
    %v846 = vmul.f32 %v764, 1.442695
    %v847 = vpow.pop %v846
    %v848 = vmul.f32 %v765, 1.442695
    %v849 = vpow.pop %v848
    %v850 = vmul.f32 %v766, 1.442695
    %v851 = vpow.pop %v850
    %v852 = vmul.f32 %v767, 1.442695
    %v853 = vpow.pop %v852
    %v854 = vmul.f32 %v768, 1.442695
    %v855 = vpow.pop %v854
    %v856 = vmul.f32 %v769, 1.442695
    %v857 = vpow.pop %v856
    %v858 = vmul.f32 %v770, 1.442695
    %v859 = vpow.pop %v858
    %v860 = vmul.f32 %v771, 1.442695
    %v861 = vpow.pop %v860
    %v862 = vmul.f32 %v772, 1.442695
    %v863 = vpow.pop %v862
    %v864 = vmul.f32 %v773, 1.442695
    %v865 = vpow.pop %v864
    %v866 = vmul.f32 %v774, 1.442695
    %v867 = vpow.pop %v866
    %v868 = vmul.f32 %v775, 1.442695
    %v869 = vpow.pop %v868
    %v870 = vmul.f32 %v776, 1.442695
    %v871 = vpow.pop %v870
    %v872 = vmul.f32 %v777, 1.442695
    %v873 = vpow.pop %v872
    %v874 = vmul.f32 %v778, 1.442695
    %v875 = vpow.pop %v874
    %v876 = vmul.f32 %v779, 1.442695
    %v877 = vpow.pop %v876
    %v878 = vmul.f32 %v780, 1.442695
    %v879 = vpow.pop %v878
    %v880 = vmul.f32 %v781, 1.442695
    %v881 = vpow.pop %v880
    %882 = vadd.xlane.f32.xlu0 %v783
    %v883 = vpop.xlane.xlu0 %882
    %884 = vadd.xlane.f32.xlu0 %v785
    %v885 = vpop.xlane.xlu0 %884
    %886 = vadd.xlane.f32.xlu0 %v787
    %v887 = vpop.xlane.xlu0 %886
    %888 = vadd.xlane.f32.xlu0 %v789
    %v889 = vpop.xlane.xlu0 %888
    %890 = vadd.xlane.f32.xlu0 %v791
    %v891 = vpop.xlane.xlu0 %890
    %892 = vadd.xlane.f32.xlu0 %v793
    %v893 = vpop.xlane.xlu0 %892
    %894 = vadd.xlane.f32.xlu0 %v795
    %v895 = vpop.xlane.xlu0 %894
    %896 = vadd.xlane.f32.xlu0 %v797
    %v897 = vpop.xlane.xlu0 %896
    %898 = vadd.xlane.f32.xlu0 %v799
    %v899 = vpop.xlane.xlu0 %898
    %900 = vadd.xlane.f32.xlu0 %v801
    %v901 = vpop.xlane.xlu0 %900
    %902 = vadd.xlane.f32.xlu0 %v803
    %v903 = vpop.xlane.xlu0 %902
    %904 = vadd.xlane.f32.xlu0 %v805
    %v905 = vpop.xlane.xlu0 %904
    %906 = vadd.xlane.f32.xlu0 %v807
    %v907 = vpop.xlane.xlu0 %906
    %908 = vadd.xlane.f32.xlu0 %v809
    %v909 = vpop.xlane.xlu0 %908
    %910 = vadd.xlane.f32.xlu0 %v811
    %v911 = vpop.xlane.xlu0 %910
    %912 = vadd.xlane.f32.xlu0 %v813
    %v913 = vpop.xlane.xlu0 %912
    %914 = vadd.xlane.f32.xlu0 %v815
    %v915 = vpop.xlane.xlu0 %914
    %916 = vadd.xlane.f32.xlu0 %v817
    %v917 = vpop.xlane.xlu0 %916
    %918 = vadd.xlane.f32.xlu0 %v819
    %v919 = vpop.xlane.xlu0 %918
    %920 = vadd.xlane.f32.xlu0 %v821
    %v921 = vpop.xlane.xlu0 %920
    %922 = vadd.xlane.f32.xlu0 %v823
    %v923 = vpop.xlane.xlu0 %922
    %924 = vadd.xlane.f32.xlu0 %v825
    %v925 = vpop.xlane.xlu0 %924
    %926 = vadd.xlane.f32.xlu0 %v827
    %v927 = vpop.xlane.xlu0 %926
    %928 = vadd.xlane.f32.xlu0 %v829
    %v929 = vpop.xlane.xlu0 %928
    %930 = vadd.xlane.f32.xlu0 %v831
    %v931 = vpop.xlane.xlu0 %930
    %932 = vadd.xlane.f32.xlu0 %v833
    %v933 = vpop.xlane.xlu0 %932
    %934 = vadd.xlane.f32.xlu0 %v835
    %v935 = vpop.xlane.xlu0 %934
    %936 = vadd.xlane.f32.xlu0 %v837
    %v937 = vpop.xlane.xlu0 %936
    %938 = vadd.xlane.f32.xlu0 %v839
    %v939 = vpop.xlane.xlu0 %938
    %940 = vadd.xlane.f32.xlu0 %v841
    %v941 = vpop.xlane.xlu0 %940
    %942 = vadd.xlane.f32.xlu0 %v843
    %v943 = vpop.xlane.xlu0 %942
    %944 = vadd.xlane.f32.xlu0 %v845
    %v945 = vpop.xlane.xlu0 %944
    %946 = vadd.xlane.f32.xlu0 %v847
    %v947 = vpop.xlane.xlu0 %946
    %948 = vadd.xlane.f32.xlu0 %v849
    %v949 = vpop.xlane.xlu0 %948
    %950 = vadd.xlane.f32.xlu0 %v851
    %v951 = vpop.xlane.xlu0 %950
    %952 = vadd.xlane.f32.xlu0 %v853
    %v953 = vpop.xlane.xlu0 %952
    %954 = vadd.xlane.f32.xlu0 %v855
    %v955 = vpop.xlane.xlu0 %954
    %956 = vadd.xlane.f32.xlu0 %v857
    %v957 = vpop.xlane.xlu0 %956
    %958 = vadd.xlane.f32.xlu0 %v859
    %v959 = vpop.xlane.xlu0 %958
    %960 = vadd.xlane.f32.xlu0 %v861
    %v961 = vpop.xlane.xlu0 %960
    %962 = vadd.xlane.f32.xlu0 %v863
    %v963 = vpop.xlane.xlu0 %962
    %964 = vadd.xlane.f32.xlu0 %v865
    %v965 = vpop.xlane.xlu0 %964
    %966 = vadd.xlane.f32.xlu0 %v867
    %v967 = vpop.xlane.xlu0 %966
    %968 = vadd.xlane.f32.xlu0 %v869
    %v969 = vpop.xlane.xlu0 %968
    %970 = vadd.xlane.f32.xlu0 %v871
    %v971 = vpop.xlane.xlu0 %970
    %972 = vadd.xlane.f32.xlu0 %v873
    %v973 = vpop.xlane.xlu0 %972
    %974 = vadd.xlane.f32.xlu0 %v875
    %v975 = vpop.xlane.xlu0 %974
    %976 = vadd.xlane.f32.xlu0 %v877
    %v977 = vpop.xlane.xlu0 %976
    %978 = vadd.xlane.f32.xlu0 %v879
    %v979 = vpop.xlane.xlu0 %978
    %980 = vadd.xlane.f32.xlu0 %v881
    %v981 = vpop.xlane.xlu0 %980
    %v982 = vrcp.pop %v883
    %v983 = vrcp.pop %v885
    %v984 = vrcp.pop %v887
    %v985 = vrcp.pop %v889
    %v986 = vrcp.pop %v891
    %v987 = vrcp.pop %v893
    %v988 = vrcp.pop %v895
    %v989 = vrcp.pop %v897
    %v990 = vrcp.pop %v899
    %v991 = vrcp.pop %v901
    %v992 = vrcp.pop %v903
    %v993 = vrcp.pop %v905
    %v994 = vrcp.pop %v907
    %v995 = vrcp.pop %v909
    %v996 = vrcp.pop %v911
    %v997 = vrcp.pop %v913
    %v998 = vrcp.pop %v915
    %v999 = vrcp.pop %v917
    %v1000 = vrcp.pop %v919
    %v1001 = vrcp.pop %v921
    %v1002 = vrcp.pop %v923
    %v1003 = vrcp.pop %v925
    %v1004 = vrcp.pop %v927
    %v1005 = vrcp.pop %v929
    %v1006 = vrcp.pop %v931
    %v1007 = vrcp.pop %v933
    %v1008 = vrcp.pop %v935
    %v1009 = vrcp.pop %v937
    %v1010 = vrcp.pop %v939
    %v1011 = vrcp.pop %v941
    %v1012 = vrcp.pop %v943
    %v1013 = vrcp.pop %v945
    %v1014 = vrcp.pop %v947
    %v1015 = vrcp.pop %v949
    %v1016 = vrcp.pop %v951
    %v1017 = vrcp.pop %v953
    %v1018 = vrcp.pop %v955
    %v1019 = vrcp.pop %v957
    %v1020 = vrcp.pop %v959
    %v1021 = vrcp.pop %v961
    %v1022 = vrcp.pop %v963
    %v1023 = vrcp.pop %v965
    %v1024 = vrcp.pop %v967
    %v1025 = vrcp.pop %v969
    %v1026 = vrcp.pop %v971
    %v1027 = vrcp.pop %v973
    %v1028 = vrcp.pop %v975
    %v1029 = vrcp.pop %v977
    %v1030 = vrcp.pop %v979
    %v1031 = vrcp.pop %v981
    %v1032 = vmul.f32 %v783, %v982
    %v1033 = vmul.f32 %v785, %v983
    %v1034 = vmul.f32 %v787, %v984
    %v1035 = vmul.f32 %v789, %v985
    %v1036 = vmul.f32 %v791, %v986
    %v1037 = vmul.f32 %v793, %v987
    %v1038 = vmul.f32 %v795, %v988
    %v1039 = vmul.f32 %v797, %v989
    %v1040 = vmul.f32 %v799, %v990
    %v1041 = vmul.f32 %v801, %v991
    %v1042 = vmul.f32 %v803, %v992
    %v1043 = vmul.f32 %v805, %v993
    %v1044 = vmul.f32 %v807, %v994
    %v1045 = vmul.f32 %v809, %v995
    %v1046 = vmul.f32 %v811, %v996
    %v1047 = vmul.f32 %v813, %v997
    %v1048 = vmul.f32 %v815, %v998
    %v1049 = vmul.f32 %v817, %v999
    %v1050 = vmul.f32 %v819, %v1000
    %v1051 = vmul.f32 %v821, %v1001
    %v1052 = vmul.f32 %v823, %v1002
    %v1053 = vmul.f32 %v825, %v1003
    %v1054 = vmul.f32 %v827, %v1004
    %v1055 = vmul.f32 %v829, %v1005
    %v1056 = vmul.f32 %v831, %v1006
    %v1057 = vmul.f32 %v833, %v1007
    %v1058 = vmul.f32 %v835, %v1008
    %v1059 = vmul.f32 %v837, %v1009
    %v1060 = vmul.f32 %v839, %v1010
    %v1061 = vmul.f32 %v841, %v1011
    %v1062 = vmul.f32 %v843, %v1012
    %v1063 = vmul.f32 %v845, %v1013
    %v1064 = vmul.f32 %v847, %v1014
    %v1065 = vmul.f32 %v849, %v1015
    %v1066 = vmul.f32 %v851, %v1016
    %v1067 = vmul.f32 %v853, %v1017
    %v1068 = vmul.f32 %v855, %v1018
    %v1069 = vmul.f32 %v857, %v1019
    %v1070 = vmul.f32 %v859, %v1020
    %v1071 = vmul.f32 %v861, %v1021
    %v1072 = vmul.f32 %v863, %v1022
    %v1073 = vmul.f32 %v865, %v1023
    %v1074 = vmul.f32 %v867, %v1024
    %v1075 = vmul.f32 %v869, %v1025
    %v1076 = vmul.f32 %v871, %v1026
    %v1077 = vmul.f32 %v873, %v1027
    %v1078 = vmul.f32 %v875, %v1028
    %v1079 = vmul.f32 %v877, %v1029
    %v1080 = vmul.f32 %v879, %v1030
    %v1081 = vmul.f32 %v881, %v1031
    %v1082 = vadd.f32 %v1032, %v1033
    %v1083 = vadd.f32 %v1082, %v1034
    %v1084 = vadd.f32 %v1083, %v1035
    %v1085 = vadd.f32 %v1084, %v1036
    %v1086 = vadd.f32 %v1085, %v1037
    %v1087 = vadd.f32 %v1086, %v1038
    %v1088 = vadd.f32 %v1087, %v1039
    %v1089 = vadd.f32 %v1088, %v1040
    %v1090 = vadd.f32 %v1089, %v1041
    %v1091 = vadd.f32 %v1090, %v1042
    %v1092 = vadd.f32 %v1091, %v1043
    %v1093 = vadd.f32 %v1092, %v1044
    %v1094 = vadd.f32 %v1093, %v1045
    %v1095 = vadd.f32 %v1094, %v1046
    %v1096 = vadd.f32 %v1095, %v1047
    %v1097 = vadd.f32 %v1096, %v1048
    %v1098 = vadd.f32 %v1097, %v1049
    %v1099 = vadd.f32 %v1098, %v1050
    %v1100 = vadd.f32 %v1099, %v1051
    %v1101 = vadd.f32 %v1100, %v1052
    %v1102 = vadd.f32 %v1101, %v1053
    %v1103 = vadd.f32 %v1102, %v1054
    %v1104 = vadd.f32 %v1103, %v1055
    %v1105 = vadd.f32 %v1104, %v1056
    %v1106 = vadd.f32 %v1105, %v1057
    %v1107 = vadd.f32 %v1106, %v1058
    %v1108 = vadd.f32 %v1107, %v1059
    %v1109 = vadd.f32 %v1108, %v1060
    %v1110 = vadd.f32 %v1109, %v1061
    %v1111 = vadd.f32 %v1110, %v1062
    %v1112 = vadd.f32 %v1111, %v1063
    %v1113 = vadd.f32 %v1112, %v1064
    %v1114 = vadd.f32 %v1113, %v1065
    %v1115 = vadd.f32 %v1114, %v1066
    %v1116 = vadd.f32 %v1115, %v1067
    %v1117 = vadd.f32 %v1116, %v1068
    %v1118 = vadd.f32 %v1117, %v1069
    %v1119 = vadd.f32 %v1118, %v1070
    %v1120 = vadd.f32 %v1119, %v1071
    %v1121 = vadd.f32 %v1120, %v1072
    %v1122 = vadd.f32 %v1121, %v1073
    %v1123 = vadd.f32 %v1122, %v1074
    %v1124 = vadd.f32 %v1123, %v1075
    %v1125 = vadd.f32 %v1124, %v1076
    %v1126 = vadd.f32 %v1125, %v1077
    %v1127 = vadd.f32 %v1126, %v1078
    %v1128 = vadd.f32 %v1127, %v1079
    %v1129 = vadd.f32 %v1128, %v1080
    %v1130 = vadd.f32 %v1129, %v1081
    %v1131 = vmul.f32 %v1130, 0.02
    %1132 = vst [vmem:[#allocation10] sm:$0xff] %v1131
    // Predicated region
    $region46: #{tpu_custom_call.1} parent=1 // pred_check
      _
    $region47: #{tpu_custom_call.1} parent=1 // pred_check_branch
      %1134 = sbr.rel (0) target = $region49
    $region48: #{tpu_custom_call.1} parent=1 // pred_region
      %s1136 = ssub.s32 128, 128
      %1137 = vsyncadd [#allocation4], %s1136
      %s1139 = sshll.u32 [#allocation10], 4
      %s1140 = int_to_ptr.vmem [resolvable:$true] %s1139
      %1142 = dma.vmem_to_hbm [thread:$0]  %s1140, 128, %s7, [#allocation4]
    $region49: #{tpu_custom_call.1} parent=1 // pred_fallthru
      _
    // Predicated region
    $region50: #{tpu_custom_call.1} parent=1 // pred_check
      _
    $region51: #{tpu_custom_call.1} parent=1 // pred_check_branch
      %1144 = sbr.rel (0) target = $region53
    $region52: #{tpu_custom_call.1} parent=1 // pred_region
      %1145 = dma.done [#allocation4], 128
    $region53: #{tpu_custom_call.1} parent=1 // pred_fallthru
      _
    %1146 = vsyncpa [#allocation3], 1
    %1147 = vsyncpa [#allocation6], 1
    %1148 = vsyncpa [#allocation9], 1
    %1149 = vsyncpa [#allocation4], 1

</llo_original>
